<compile_context>
chip_gen: v7x
topology: tpu7x:2x2x1
jax: 0.10.0
libtpu: 0.0.40
codegen_flags: <defaults>
</compile_context>

<pallas_src>
import math
import functools

import jax
import jax.numpy as jnp
from jax import lax
from jax.experimental import pallas as pl
from jax.experimental.pallas import tpu as pltpu


_NEG_INF = -1e30                      # safe: first kv tile is always unmasked
_VMEM_LIMIT = 48 * 1024 * 1024        # explicit scoped-VMEM limit (v7x-safe)
_FUSED_WEIGHT_BUDGET = 12 * 1024 * 1024  # keep weights resident below this


def _pick_tile(dim, candidates):
    """Largest candidate that evenly divides `dim`, else the full dim."""
    for c in candidates:
        if dim >= c and dim % c == 0:
            return c
    return dim


# ----------------------------------------------------------------------------
# 1) Fused QKV projection + head split.
#    x: (B, T, C), wq/wk/wv: (H, C, D) -> q/k/v: (B, H, T, D)
# ----------------------------------------------------------------------------
def _qkv_head_split_kernel(x_ref, wq_ref, wk_ref, wv_ref, q_ref, k_ref, v_ref):
    h = pl.program_id(2)
    x = x_ref[0]                                             # (tm, C)
    q_ref[0, 0] = jnp.dot(x, wq_ref[h],
                          preferred_element_type=jnp.float32).astype(q_ref.dtype)
    k_ref[0, 0] = jnp.dot(x, wk_ref[h],
                          preferred_element_type=jnp.float32).astype(k_ref.dtype)
    v_ref[0, 0] = jnp.dot(x, wv_ref[h],
                          preferred_element_type=jnp.float32).astype(v_ref.dtype)


def _qkv_head_split(x, wq, wk, wv):
    B, T, C = x.shape
    H, _, D = wq.shape
    tm = _pick_tile(T, (512, 256, 128, 64, 32, 16, 8))
    cost = pl.CostEstimate(
        flops=int(2 * B * T * C * 3 * C),
        transcendentals=0,
        bytes_accessed=int(x.dtype.itemsize * (4 * B * T * C + 3 * C * C)),
    )
    out_sds = jax.ShapeDtypeStruct((B, H, T, D), x.dtype)
    # Weights: full-array block with a constant index_map -> DMA'd once,
    # stays VMEM-resident across the whole grid.
    w_spec = pl.BlockSpec((H, C, D), lambda b, i, h: (0, 0, 0))
    o_spec = pl.BlockSpec((1, 1, tm, D), lambda b, i, h: (b, h, i, 0))
    return pl.pallas_call(
        _qkv_head_split_kernel,
        out_shape=(out_sds, out_sds, out_sds),
        grid_spec=pltpu.PrefetchScalarGridSpec(
            num_scalar_prefetch=0,
            grid=(B, T // tm, H),          # h innermost: x block stays resident
            in_specs=[
                pl.BlockSpec((1, tm, C), lambda b, i, h: (b, i, 0)),
                w_spec, w_spec, w_spec,
            ],
            out_specs=(o_spec, o_spec, o_spec),
        ),
        compiler_params=pltpu.CompilerParams(
            dimension_semantics=("parallel", "parallel", "parallel"),
            vmem_limit_bytes=_VMEM_LIMIT),
        cost_estimate=cost,
    )(x, wq, wk, wv)


# ----------------------------------------------------------------------------
# 2) Flash-attention forward kernel (causal, online softmax).
# ----------------------------------------------------------------------------
def _flash_attn_kernel(q_ref, k_ref, v_ref, o_ref, m_sc, l_sc, acc_sc, *, tq, tk):
    qi = pl.program_id(1)
    ki = pl.program_id(2)

    @pl.when(ki == 0)
    def _():
        m_sc[...] = jnp.full_like(m_sc, _NEG_INF)
        l_sc[...] = jnp.zeros_like(l_sc)
        acc_sc[...] = jnp.zeros_like(acc_sc)

    q_start = qi * tq
    k_start = ki * tk
    # Tile contributes at all (some key index <= some query index in the tile).
    needed = k_start <= q_start + tq - 1
    # Tile lies entirely at/below the diagonal -> no mask needed.
    fully_unmasked = (k_start + tk - 1) <= q_start

    def process(apply_mask):
        # 1/sqrt(D) is already folded into the Q projection weights.
        q = q_ref[0]                               # (tq, D)
        k = k_ref[0]                               # (tk, D)
        v = v_ref[0]                               # (tk, D)
        # S = q @ k^T via dot_general contracting D (no transpose materialized).
        s = lax.dot_general(q, k, (((1,), (1,)), ((), ())),
                            preferred_element_type=jnp.float32)  # (tq, tk) f32
        if apply_mask:  # only diagonal-crossing tiles pay for the mask
            rows = q_start + lax.broadcasted_iota(jnp.int32, (tq, 1), 0)
            cols = k_start + lax.broadcasted_iota(jnp.int32, (1, tk), 1)
            s = jnp.where(rows >= cols, s, _NEG_INF)   # broadcast compare
        m_prev = m_sc[...]
        m_new = jnp.maximum(m_prev, jnp.max(s, axis=-1, keepdims=True))
        alpha = jnp.exp(m_prev - m_new)
        p = jnp.exp(s - m_new)                     # (tq, tk) f32
        l_sc[...] = alpha * l_sc[...] + jnp.sum(p, axis=-1, keepdims=True)
        pv = jnp.dot(p.astype(v.dtype), v, preferred_element_type=jnp.float32)
        acc_sc[...] = alpha * acc_sc[...] + pv
        m_sc[...] = m_new

    # Causal skipping: tiles entirely above the diagonal do no compute (their
    # DMA is also skipped via the clamped kv index_map in the wrapper).
    @pl.when(needed & fully_unmasked)
    def _():
        process(apply_mask=False)

    @pl.when(needed & jnp.logical_not(fully_unmasked))
    def _():
        process(apply_mask=True)

    @pl.when(ki == pl.num_programs(2) - 1)
    def _():
        inv_l = pl.reciprocal(l_sc[...], approx=True)   # EUP slot, ~free
        o_ref[0] = (acc_sc[...] * inv_l).astype(o_ref.dtype)


def _flash_attention(q, k, v):
    """q/k/v: (B*H, T, D) -> (B*H, T, D)."""
    BH, T, D = q.shape
    # Prefer tq >= tk: finer causal skipping, fewer K/V streams.
    tq = _pick_tile(T, (256, 128, 64, 32, 16, 8))
    tk = min(tq, _pick_tile(T, (256, 128, 64, 32, 16, 8)))

    def q_map(bh, qi, ki):
        return (bh, qi, 0)

    def kv_map(bh, qi, ki):
        # Clamp to the last kv block this q tile needs: fully-masked tiles
        # re-map to the already-resident block, so Pallas issues no DMA.
        last = ((qi + 1) * tq - 1) // tk
        return (bh, jnp.minimum(ki, last), 0)

    # TODO(synk): on v5e consider pipeline_mode=pl.Buffered(3) on the k/v specs.
    kernel = functools.partial(_flash_attn_kernel, tq=tq, tk=tk)
    cost = pl.CostEstimate(
        flops=int(4 * BH * T * T * D),
        transcendentals=int(BH * T * T),
        bytes_accessed=int(q.dtype.itemsize * 4 * BH * T * D),
    )
    return pl.pallas_call(
        kernel,
        out_shape=jax.ShapeDtypeStruct((BH, T, D), q.dtype),
        grid_spec=pltpu.PrefetchScalarGridSpec(
            num_scalar_prefetch=0,
            grid=(BH, T // tq, T // tk),
            in_specs=[
                pl.BlockSpec((1, tq, D), q_map),
                pl.BlockSpec((1, tk, D), kv_map),
                pl.BlockSpec((1, tk, D), kv_map),
            ],
            out_specs=pl.BlockSpec((1, tq, D), lambda bh, qi, ki: (bh, qi, 0)),
            scratch_shapes=[
                pltpu.VMEM((tq, 1), jnp.float32),   # running max m
                pltpu.VMEM((tq, 1), jnp.float32),   # running denom l
                pltpu.VMEM((tq, D), jnp.float32),   # output accumulator
            ],
        ),
        compiler_params=pltpu.CompilerParams(
            dimension_semantics=("parallel", "parallel", "arbitrary"),
            vmem_limit_bytes=_VMEM_LIMIT),
        cost_estimate=cost,
    )(q, k, v)


# ----------------------------------------------------------------------------
# 3) Fused head merge + output projection.
#    y: (B*H, T, D), wp: (H, D, C) -> out: (B, T, C)   (reduction over heads)
# ----------------------------------------------------------------------------
def _merge_proj_kernel(y_ref, wp_ref, o_ref, acc_ref):
    h = pl.program_id(2)

    @pl.when(h == 0)
    def _():
        acc_ref[...] = jnp.zeros_like(acc_ref)

    acc_ref[...] += jnp.dot(y_ref[0], wp_ref[h],
                            preferred_element_type=jnp.float32)

    @pl.when(h == pl.num_programs(2) - 1)
    def _():
        o_ref[0] = acc_ref[...].astype(o_ref.dtype)


def _merge_heads_out_proj(y, wp, B, H):
    BH, T, D = y.shape
    C = wp.shape[-1]
    tm = _pick_tile(T, (512, 256, 128, 64, 32, 16, 8))
    cost = pl.CostEstimate(
        flops=int(2 * B * T * C * C),
        transcendentals=0,
        bytes_accessed=int(y.dtype.itemsize * (2 * B * T * C + C * C)),
    )
    return pl.pallas_call(
        _merge_proj_kernel,
        out_shape=jax.ShapeDtypeStruct((B, T, C), y.dtype),
        grid_spec=pltpu.PrefetchScalarGridSpec(
            num_scalar_prefetch=0,
            grid=(B, T // tm, H),
            in_specs=[
                pl.BlockSpec((1, tm, D), lambda b, i, h: (b * H + h, i, 0)),
                pl.BlockSpec((H, D, C), lambda b, i, h: (0, 0, 0)),  # resident
            ],
            out_specs=pl.BlockSpec((1, tm, C), lambda b, i, h: (b, i, 0)),
            scratch_shapes=[pltpu.VMEM((tm, C), jnp.float32)],
        ),
        compiler_params=pltpu.CompilerParams(
            dimension_semantics=("parallel", "parallel", "arbitrary"),
            vmem_limit_bytes=_VMEM_LIMIT),
        cost_estimate=cost,
    )(y, wp)


# ----------------------------------------------------------------------------
# Fallback: generic tiled matmul (only for very large C where weights do not
# comfortably fit VMEM-resident).
# ----------------------------------------------------------------------------
def _matmul_kernel(a_ref, b_ref, o_ref, acc_ref):
    @pl.when(pl.program_id(2) == 0)
    def _():
        acc_ref[...] = jnp.zeros_like(acc_ref)

    acc_ref[...] += jnp.dot(a_ref[...], b_ref[...],
                            preferred_element_type=jnp.float32)

    @pl.when(pl.program_id(2) == pl.num_programs(2) - 1)
    def _():
        o_ref[...] = acc_ref[...].astype(o_ref.dtype)


def _matmul(a, b):
    M, K = a.shape
    _, N = b.shape
    tm = _pick_tile(M, (512, 256, 128, 64, 32, 16, 8))
    tn = _pick_tile(N, (1024, 512, 256, 128))
    tk = _pick_tile(K, (1024, 512, 256, 128))
    return pl.pallas_call(
        _matmul_kernel,
        out_shape=jax.ShapeDtypeStruct((M, N), a.dtype),
        grid_spec=pltpu.PrefetchScalarGridSpec(
            num_scalar_prefetch=0,
            grid=(M // tm, N // tn, K // tk),
            in_specs=[
                pl.BlockSpec((tm, tk), lambda i, j, k: (i, k)),
                pl.BlockSpec((tk, tn), lambda i, j, k: (k, j)),
            ],
            out_specs=pl.BlockSpec((tm, tn), lambda i, j, k: (i, j)),
            scratch_shapes=[pltpu.VMEM((tm, tn), jnp.float32)],
        ),
        compiler_params=pltpu.CompilerParams(
            dimension_semantics=("parallel", "parallel", "arbitrary"),
            vmem_limit_bytes=_VMEM_LIMIT),
    )(a, b)


# ----------------------------------------------------------------------------
# Full forward pass (wrapper)
# ----------------------------------------------------------------------------
def causal_self_attention(x, w_qkv, w_proj, n_heads):
    """x: (B, T, C); w_qkv: (3C, C); w_proj: (C, C) (nn.Linear convention)."""
    B, T, C = x.shape
    H = n_heads
    D = C // H
    scale = 1.0 / math.sqrt(D)

    # One-off weight prep (tiny matrices): input-major layout, per-head split,
    # 1/sqrt(D) folded into the Q projection so the attention kernel never
    # rescales q per kv step.
    w3 = w_qkv.T.reshape(C, 3, H, D).transpose(1, 2, 0, 3)    # (3, H, C, D)
    wq = w3[0] * scale
    wk = w3[1]
    wv = w3[2]
    wp = w_proj.T.reshape(H, D, C)                            # (H, D, C)

    fused = 3 * C * C * x.dtype.itemsize <= _FUSED_WEIGHT_BUDGET
    if fused:
        # 1) QKV projection writes directly into the (B, H, T, D) layout.
        q, k, v = _qkv_head_split(x, wq, wk, wv)
        q = q.reshape(B * H, T, D)          # contiguous reshape (free)
        k = k.reshape(B * H, T, D)
        v = v.reshape(B * H, T, D)
        # 2) Causal flash attention.
        y = _flash_attention(q, k, v)                          # (B*H, T, D)
        # 3) Head merge + output projection (lane-dense (B, T, C) store).
        return _merge_heads_out_proj(y, wp, B, H)

    # Fallback for very large C: generic tiled matmuls + XLA head split/merge.
    qkv = _matmul(x.reshape(B * T, C), w_qkv.T)                # (B*T, 3C)
    qkv = qkv.reshape(B, T, 3, H, D)
    q = (qkv[:, :, 0] * scale).transpose(0, 2, 1, 3).reshape(B * H, T, D)
    k = qkv[:, :, 1].transpose(0, 2, 1, 3).reshape(B * H, T, D)
    v = qkv[:, :, 2].transpose(0, 2, 1, 3).reshape(B * H, T, D)
    y = _flash_attention(q, k, v)
    y = y.reshape(B, H, T, D).transpose(0, 2, 1, 3).reshape(B * T, C)
    return _matmul(y, w_proj.T).reshape(B, T, C)


def _reference(x, w_qkv, w_proj, n_heads):
    """Pure-JAX reference mirroring the PyTorch forward (eval mode)."""
    B, T, C = x.shape
    D = C // n_heads
    qkv = x @ w_qkv.T
    q, k, v = jnp.split(qkv, 3, axis=2)

    def heads(t):
        return t.reshape(B, T, n_heads, D).transpose(0, 2, 1, 3)

    q, k, v = heads(q), heads(k), heads(v)
    att = (q @ k.transpose(0, 1, 3, 2)) * (1.0 / math.sqrt(D))
    mask = jnp.tril(jnp.ones((T, T), dtype=bool))
    att = jnp.where(mask[None, None], att, -jnp.inf)
    att = jax.nn.softmax(att, axis=-1)
    y = att @ v
    y = y.transpose(0, 2, 1, 3).reshape(B, T, C)
    return y @ w_proj.T


if __name__ == "__main__":
    # small shapes consistent with the module
    B, T, C, H = 2, 8, 32, 4          # batch, seq, n_dims, n_heads
    key = jax.random.PRNGKey(0)
    kx, kw1, kw2 = jax.random.split(key, 3)

    x = jax.random.normal(kx, (B, T, C), dtype=jnp.float32)
    # nn.Linear default init: U(-1/sqrt(fan_in), 1/sqrt(fan_in)), bias=False
    bound = 1.0 / math.sqrt(C)
    w_qkv = jax.random.uniform(kw1, (3 * C, C), minval=-bound, maxval=bound,
                               dtype=jnp.float32)
    w_proj = jax.random.uniform(kw2, (C, C), minval=-bound, maxval=bound,
                                dtype=jnp.float32)

    out = causal_self_attention(x, w_qkv, w_proj, H)
    out = jax.block_until_ready(out)

    ref = _reference(x, w_qkv, w_proj, H)
    assert out.shape == (B, T, C)
    # approx reciprocal in the finalize contributes ~1e-4 relative error.
    assert jnp.allclose(out, ref, atol=2e-3, rtol=2e-3), "mismatch vs reference"

    print("KERNEL_OK")
</pallas_src>

<mosaic_0001>
module attributes {stable_mosaic.version = 11 : i64} {
  func.func @_qkv_head_split_kernel(%arg0: i32, %arg1: i32, %arg2: i32, %arg3: memref<1x8x32xf32, #tpu.memory_space<vmem>>, %arg4: memref<4x32x8xf32, #tpu.memory_space<vmem>>, %arg5: memref<4x32x8xf32, #tpu.memory_space<vmem>>, %arg6: memref<4x32x8xf32, #tpu.memory_space<vmem>>, %arg7: memref<1x1x8x8xf32, #tpu.memory_space<vmem>>, %arg8: memref<1x1x8x8xf32, #tpu.memory_space<vmem>>, %arg9: memref<1x1x8x8xf32, #tpu.memory_space<vmem>>) attributes {dimension_semantics = [#tpu.dimension_semantics<parallel>, #tpu.dimension_semantics<parallel>, #tpu.dimension_semantics<parallel>], iteration_bounds = array<i64: 2, 1, 4>, scalar_prefetch = 0 : i64, scratch_operands = 0 : i64, tpu.core_type = #tpu.core_type<tc>, window_params = [{transform_indices = @transform_0, window_bounds = array<i64: 1, 8, 32>}, {pipeline_mode = #tpu.pipeline_mode<synchronous>, transform_indices = @transform_1, window_bounds = array<i64: 4, 32, 8>}, {pipeline_mode = #tpu.pipeline_mode<synchronous>, transform_indices = @transform_2, window_bounds = array<i64: 4, 32, 8>}, {pipeline_mode = #tpu.pipeline_mode<synchronous>, transform_indices = @transform_3, window_bounds = array<i64: 4, 32, 8>}, {transform_indices = @transform_4, window_bounds = array<i64: 1, 1, 8, 8>}, {transform_indices = @transform_5, window_bounds = array<i64: 1, 1, 8, 8>}, {transform_indices = @transform_6, window_bounds = array<i64: 1, 1, 8, 8>}]} {
    %c0 = arith.constant 0 : index
    %c0_0 = arith.constant 0 : index
    %c0_1 = arith.constant 0 : index
    %0 = vector.load %arg3[%c0, %c0_0, %c0_1] : memref<1x8x32xf32, #tpu.memory_space<vmem>>, vector<1x8x32xf32>
    %1 = vector.shape_cast %0 : vector<1x8x32xf32> to vector<8x32xf32>
    %2 = arith.index_cast %arg2 : i32 to index
    %c0_2 = arith.constant 0 : index
    %c0_3 = arith.constant 0 : index
    %3 = vector.load %arg4[%2, %c0_2, %c0_3] : memref<4x32x8xf32, #tpu.memory_space<vmem>>, vector<1x32x8xf32>
    %4 = vector.shape_cast %3 : vector<1x32x8xf32> to vector<32x8xf32>
    %cst = arith.constant dense<0.000000e+00> : vector<8x8xf32>
    %5 = tpu.matmul %1, %4, %cst {dimension_numbers = #tpu.dot_dimension_numbers<[1], [0], [0], [1], [0, 0, 1, 1], [], []>} : vector<8x32xf32>, vector<32x8xf32>, vector<8x8xf32> -> vector<8x8xf32>
    %c0_4 = arith.constant 0 : index
    %c0_5 = arith.constant 0 : index
    %c0_6 = arith.constant 0 : index
    %c0_7 = arith.constant 0 : index
    %6 = vector.load %arg7[%c0_4, %c0_5, %c0_6, %c0_7] : memref<1x1x8x8xf32, #tpu.memory_space<vmem>>, vector<1x1x8x8xf32>
    %7 = vector.shape_cast %6 : vector<1x1x8x8xf32> to vector<8x8xf32>
    %8 = vector.shape_cast %5 : vector<8x8xf32> to vector<1x1x8x8xf32>
    tpu.vector_store %arg7[%c0_4, %c0_5, %c0_6, %c0_7], %8 {strides = array<i32>} : memref<1x1x8x8xf32, #tpu.memory_space<vmem>>, vector<1x1x8x8xf32>,
    %9 = arith.index_cast %arg2 : i32 to index
    %c0_8 = arith.constant 0 : index
    %c0_9 = arith.constant 0 : index
    %10 = vector.load %arg5[%9, %c0_8, %c0_9] : memref<4x32x8xf32, #tpu.memory_space<vmem>>, vector<1x32x8xf32>
    %11 = vector.shape_cast %10 : vector<1x32x8xf32> to vector<32x8xf32>
    %cst_10 = arith.constant dense<0.000000e+00> : vector<8x8xf32>
    %12 = tpu.matmul %1, %11, %cst_10 {dimension_numbers = #tpu.dot_dimension_numbers<[1], [0], [0], [1], [0, 0, 1, 1], [], []>} : vector<8x32xf32>, vector<32x8xf32>, vector<8x8xf32> -> vector<8x8xf32>
    %c0_11 = arith.constant 0 : index
    %c0_12 = arith.constant 0 : index
    %c0_13 = arith.constant 0 : index
    %c0_14 = arith.constant 0 : index
    %13 = vector.load %arg8[%c0_11, %c0_12, %c0_13, %c0_14] : memref<1x1x8x8xf32, #tpu.memory_space<vmem>>, vector<1x1x8x8xf32>
    %14 = vector.shape_cast %13 : vector<1x1x8x8xf32> to vector<8x8xf32>
    %15 = vector.shape_cast %12 : vector<8x8xf32> to vector<1x1x8x8xf32>
    tpu.vector_store %arg8[%c0_11, %c0_12, %c0_13, %c0_14], %15 {strides = array<i32>} : memref<1x1x8x8xf32, #tpu.memory_space<vmem>>, vector<1x1x8x8xf32>,
    %16 = arith.index_cast %arg2 : i32 to index
    %c0_15 = arith.constant 0 : index
    %c0_16 = arith.constant 0 : index
    %17 = vector.load %arg6[%16, %c0_15, %c0_16] : memref<4x32x8xf32, #tpu.memory_space<vmem>>, vector<1x32x8xf32>
    %18 = vector.shape_cast %17 : vector<1x32x8xf32> to vector<32x8xf32>
    %cst_17 = arith.constant dense<0.000000e+00> : vector<8x8xf32>
    %19 = tpu.matmul %1, %18, %cst_17 {dimension_numbers = #tpu.dot_dimension_numbers<[1], [0], [0], [1], [0, 0, 1, 1], [], []>} : vector<8x32xf32>, vector<32x8xf32>, vector<8x8xf32> -> vector<8x8xf32>
    %c0_18 = arith.constant 0 : index
    %c0_19 = arith.constant 0 : index
    %c0_20 = arith.constant 0 : index
    %c0_21 = arith.constant 0 : index
    %20 = vector.load %arg9[%c0_18, %c0_19, %c0_20, %c0_21] : memref<1x1x8x8xf32, #tpu.memory_space<vmem>>, vector<1x1x8x8xf32>
    %21 = vector.shape_cast %20 : vector<1x1x8x8xf32> to vector<8x8xf32>
    %22 = vector.shape_cast %19 : vector<8x8xf32> to vector<1x1x8x8xf32>
    tpu.vector_store %arg9[%c0_18, %c0_19, %c0_20, %c0_21], %22 {strides = array<i32>} : memref<1x1x8x8xf32, #tpu.memory_space<vmem>>, vector<1x1x8x8xf32>,
    return
  }
  func.func @transform_0(%arg0: i32, %arg1: i32, %arg2: i32) -> (i32, i32, i32) {
    %c0_i32 = arith.constant 0 : i32
    %c0_i32_0 = arith.constant 0 : i32
    return %arg0, %arg1, %c0_i32 : i32, i32, i32
  }
  func.func @transform_1(%arg0: i32, %arg1: i32, %arg2: i32) -> (i32, i32, i32) {
    %c0_i32 = arith.constant 0 : i32
    %c0_i32_0 = arith.constant 0 : i32
    %c0_i32_1 = arith.constant 0 : i32
    %c0_i32_2 = arith.constant 0 : i32
    return %c0_i32, %c0_i32_0, %c0_i32_1 : i32, i32, i32
  }
  func.func @transform_2(%arg0: i32, %arg1: i32, %arg2: i32) -> (i32, i32, i32) {
    %c0_i32 = arith.constant 0 : i32
    %c0_i32_0 = arith.constant 0 : i32
    %c0_i32_1 = arith.constant 0 : i32
    %c0_i32_2 = arith.constant 0 : i32
    return %c0_i32, %c0_i32_0, %c0_i32_1 : i32, i32, i32
  }
  func.func @transform_3(%arg0: i32, %arg1: i32, %arg2: i32) -> (i32, i32, i32) {
    %c0_i32 = arith.constant 0 : i32
    %c0_i32_0 = arith.constant 0 : i32
    %c0_i32_1 = arith.constant 0 : i32
    %c0_i32_2 = arith.constant 0 : i32
    return %c0_i32, %c0_i32_0, %c0_i32_1 : i32, i32, i32
  }
  func.func @transform_4(%arg0: i32, %arg1: i32, %arg2: i32) -> (i32, i32, i32, i32) {
    %c0_i32 = arith.constant 0 : i32
    %c0_i32_0 = arith.constant 0 : i32
    return %arg0, %arg2, %arg1, %c0_i32 : i32, i32, i32, i32
  }
  func.func @transform_5(%arg0: i32, %arg1: i32, %arg2: i32) -> (i32, i32, i32, i32) {
    %c0_i32 = arith.constant 0 : i32
    %c0_i32_0 = arith.constant 0 : i32
    return %arg0, %arg2, %arg1, %c0_i32 : i32, i32, i32, i32
  }
  func.func @transform_6(%arg0: i32, %arg1: i32, %arg2: i32) -> (i32, i32, i32, i32) {
    %c0_i32 = arith.constant 0 : i32
    %c0_i32_0 = arith.constant 0 : i32
    return %arg0, %arg2, %arg1, %c0_i32 : i32, i32, i32, i32
  }
}

</mosaic_0001>

<llo_original>
// kernel: tpu_custom_call.1
$region0: #{tpu_custom_call.1}
  #allocation0 [shape = 'u32[]', space=smem, size = 0x4, offset = 0x4, fixed_abs, tag = 'smem constant byte address 0x4 - core index']
  #allocation1 [shape = 'u32[144,128]{1,0:T(1,128)}', space=vmem, size = 0x12000, scoped, tag = 'internal scratch']
  %s0 = inlined_call_operand.vmem [shape: f32[2,8,32], index: 0, kind: input, shape index: {}]
  %s1 = inlined_call_operand.vmem [shape: f32[4,32,8], index: 1, kind: input, shape index: {}]
  %s2 = inlined_call_operand.vmem [shape: f32[4,32,8], index: 2, kind: input, shape index: {}]
  %s3 = inlined_call_operand.vmem [shape: f32[4,32,8], index: 3, kind: input, shape index: {}]
  %s4 = inlined_call_operand.hbm [shape: f32[2,4,8,8], index: 4, kind: output, shape index: {0}]
  %s5 = inlined_call_operand.hbm [shape: f32[2,4,8,8], index: 5, kind: output, shape index: {1}]
  %s6 = inlined_call_operand.hbm [shape: f32[2,4,8,8], index: 6, kind: output, shape index: {2}]
  %7 = xla_tuple %s4, %s5, %s6
  %s8 = sld [smem:[#allocation0]]
  $region65: #{tpu_custom_call.1} parent=0
    _
  %s10 = ssub.s32 1, %s8
  %s11 = scalar_select 0, %s10, %s8
  $region1: #{tpu_custom_call.1} parent=0
    #allocation2 [shape = 'u8[8192]{0}', space=vmem, size = 0x2000, scoped, tag = 'output window, operand 0']
    #allocation3 [shape = 's32[2]{0}', space=sflag, size = 0x8, scoped, tag = 'scoped memory for tpu_custom_call.1']
    #allocation4 [shape = 'u8[8192]{0}', space=vmem, size = 0x2000, scoped, tag = 'output window, operand 1']
    #allocation5 [shape = 's32[2]{0}', space=sflag, size = 0x8, scoped, tag = 'scoped memory for tpu_custom_call.1']
    #allocation6 [shape = 'u8[8192]{0}', space=vmem, size = 0x2000, scoped, tag = 'output window, operand 2']
    %12 = vsyncpa [#allocation3], 0
    %s13 = scalar_lea.sflag [#allocation3], 1
    %14 = vsyncpa %s13, 0
    %15 = vsyncpa [#allocation5], 0
    %s16 = scalar_lea.sflag [#allocation5], 1
    %17 = vsyncpa %s16, 0
    loop: start=0, step=1, limit=10
    $region2: #{tpu_custom_call.1} parent=1 // loop_pre_header
      _
    $region3: #{tpu_custom_call.1} parent=1 // loop_header
      %s19 = sphi 0, %s23
      %p20 = scmp.ge.s32.totalorder %s19, 10
      %s26 = sphi 0, %s45
      %s27 = sphi 0, %s41
      %s28 = sphi 0, %s37
      %s29 = sphi 0, %s26
      %s30 = sphi 0, %s27
      %s31 = sphi 0, %s28
      %s32 = sphi 0, %s29
      %s33 = sphi 0, %s30
      %s34 = sphi 0, %s31
      %s50 = sphi 0, %s52
      %s53 = sphi 0, %s50
      %s54 = sphi 0, %s53
      %s70 = sphi 0, %s54
      %s74 = sphi 0, %s74
      %s76 = sphi 0, %s74
      %s77 = sphi 0, %s76
      %s91 = sphi 0, %s77
      %s95 = sphi 0, %s95
      %s97 = sphi 0, %s95
      %s98 = sphi 0, %s97
      %s112 = sphi 0, %s98
      %s116 = sphi 0, %s116
      %s118 = sphi 0, %s116
      %s119 = sphi 0, %s118
      %s133 = sphi 0, %s119
      %s143 = sphi 0, %s145
      %s146 = sphi 0, %s143
      %s147 = sphi 0, %s146
      %s163 = sphi 0, %s147
      %s173 = sphi 0, %s175
      %s176 = sphi 0, %s173
      %s177 = sphi 0, %s176
      %s193 = sphi 0, %s177
      %s203 = sphi 0, %s205
      %s206 = sphi 0, %s203
      %s207 = sphi 0, %s206
      %s223 = sphi 0, %s207
    $region4: #{tpu_custom_call.1} parent=1 // loop_header_branch
      %22 = sbr.rel (%p20) target = $region8
    $region5: #{tpu_custom_call.1} parent=1 // loop_body
      %s24 = ssub.s32 %s19, 1
      %s25 = ssub.s32 %s19, 2
      %s35 = sadd.s32 1, %s28
      %p36 = scmp.ge.s32.totalorder %s35, 4
      %s37 = scalar_select %p36, 0, %s35
      %s38 = sadd.s32 1, %s27
      %s39 = scalar_select %p36, %s38, %s27
      %p40 = scmp.ge.s32.totalorder %s39, 1
      %s41 = scalar_select %p40, 0, %s39
      %s42 = sadd.s32 1, %s26
      %s43 = scalar_select %p40, %s42, %s26
      %p44 = scmp.ge.s32.totalorder %s43, 2
      %s45 = scalar_select %p44, 0, %s43
      %s46 = ssub.s32 %s26, %s45
      %s47 = ssub.s32 %s27, %s41
      %s48 = sor.u32 %s46, %s47
      %p49 = scmp.eq.s32.totalorder %s48, 0
      %s51 = sadd.s32 %s50, 1
      %s52 = scalar_select %p49, %s50, %s51
      %p55 = pneg %p49
      %p56 = scmp.eq.s32.totalorder %s19, 7
      %p57 = por %p55, %p56
      %p58 = scmp.ne.s32.totalorder %s50, %s53
      %p59 = scmp.eq.s32.totalorder %s19, 0
      %p60 = por %p58, %p59
      %p61 = scmp.ne.s32.totalorder %s50, %s53
      %p62 = scmp.eq.s32.totalorder %s24, 7
      %p63 = por %p61, %p62
      %p64 = scmp.ne.s32.totalorder %s53, %s54
      %p65 = scmp.eq.s32.totalorder %s24, 0
      %p66 = por %p64, %p65
      %p67 = scmp.ne.s32.totalorder %s53, %s54
      %p68 = scmp.eq.s32.totalorder %s25, 7
      %p69 = por %p67, %p68
      %p71 = scmp.ne.s32.totalorder %s54, %s70
      %p72 = scmp.eq.s32.totalorder %s25, 0
      %p73 = por %p71, %p72
      %s75 = sadd.s32 %s74, 1
      %p78 = scmp.eq.s32.totalorder %s19, 7
      %p79 = scmp.ne.s32.totalorder %s74, %s76
      %p80 = scmp.eq.s32.totalorder %s19, 0
      %p81 = por %p79, %p80
      %p82 = scmp.ne.s32.totalorder %s74, %s76
      %p83 = scmp.eq.s32.totalorder %s24, 7
      %p84 = por %p82, %p83
      %p85 = scmp.ne.s32.totalorder %s76, %s77
      %p86 = scmp.eq.s32.totalorder %s24, 0
      %p87 = por %p85, %p86
      %p88 = scmp.ne.s32.totalorder %s76, %s77
      %p89 = scmp.eq.s32.totalorder %s25, 7
      %p90 = por %p88, %p89
      %p92 = scmp.ne.s32.totalorder %s77, %s91
      %p93 = scmp.eq.s32.totalorder %s25, 0
      %p94 = por %p92, %p93
      %s96 = sadd.s32 %s95, 1
      %p99 = scmp.eq.s32.totalorder %s19, 7
      %p100 = scmp.ne.s32.totalorder %s95, %s97
      %p101 = scmp.eq.s32.totalorder %s19, 0
      %p102 = por %p100, %p101
      %p103 = scmp.ne.s32.totalorder %s95, %s97
      %p104 = scmp.eq.s32.totalorder %s24, 7
      %p105 = por %p103, %p104
      %p106 = scmp.ne.s32.totalorder %s97, %s98
      %p107 = scmp.eq.s32.totalorder %s24, 0
      %p108 = por %p106, %p107
      %p109 = scmp.ne.s32.totalorder %s97, %s98
      %p110 = scmp.eq.s32.totalorder %s25, 7
      %p111 = por %p109, %p110
      %p113 = scmp.ne.s32.totalorder %s98, %s112
      %p114 = scmp.eq.s32.totalorder %s25, 0
      %p115 = por %p113, %p114
      %s117 = sadd.s32 %s116, 1
      %p120 = scmp.eq.s32.totalorder %s19, 7
      %p121 = scmp.ne.s32.totalorder %s116, %s118
      %p122 = scmp.eq.s32.totalorder %s19, 0
      %p123 = por %p121, %p122
      %p124 = scmp.ne.s32.totalorder %s116, %s118
      %p125 = scmp.eq.s32.totalorder %s24, 7
      %p126 = por %p124, %p125
      %p127 = scmp.ne.s32.totalorder %s118, %s119
      %p128 = scmp.eq.s32.totalorder %s24, 0
      %p129 = por %p127, %p128
      %p130 = scmp.ne.s32.totalorder %s118, %s119
      %p131 = scmp.eq.s32.totalorder %s25, 7
      %p132 = por %p130, %p131
      %p134 = scmp.ne.s32.totalorder %s119, %s133
      %p135 = scmp.eq.s32.totalorder %s25, 0
      %p136 = por %p134, %p135
      %s137 = ssub.s32 %s26, %s45
      %s138 = ssub.s32 %s28, %s37
      %s139 = sor.u32 %s137, %s138
      %s140 = ssub.s32 %s27, %s41
      %s141 = sor.u32 %s139, %s140
      %p142 = scmp.eq.s32.totalorder %s141, 0
      %s144 = sadd.s32 %s143, 1
      %s145 = scalar_select %p142, %s143, %s144
      %p148 = pneg %p142
      %p149 = scmp.eq.s32.totalorder %s19, 7
      %p150 = por %p148, %p149
      %p151 = scmp.ne.s32.totalorder %s143, %s146
      %p152 = scmp.eq.s32.totalorder %s19, 0
      %p153 = por %p151, %p152
      %p154 = scmp.ne.s32.totalorder %s143, %s146
      %p155 = scmp.eq.s32.totalorder %s24, 7
      %p156 = por %p154, %p155
      %p157 = scmp.ne.s32.totalorder %s146, %s147
      %p158 = scmp.eq.s32.totalorder %s24, 0
      %p159 = por %p157, %p158
      %p160 = scmp.ne.s32.totalorder %s146, %s147
      %p161 = scmp.eq.s32.totalorder %s25, 7
      %p162 = por %p160, %p161
      %p164 = scmp.ne.s32.totalorder %s147, %s163
      %p165 = scmp.eq.s32.totalorder %s25, 0
      %p166 = por %p164, %p165
      %s167 = ssub.s32 %s26, %s45
      %s168 = ssub.s32 %s28, %s37
      %s169 = sor.u32 %s167, %s168
      %s170 = ssub.s32 %s27, %s41
      %s171 = sor.u32 %s169, %s170
      %p172 = scmp.eq.s32.totalorder %s171, 0
      %s174 = sadd.s32 %s173, 1
      %s175 = scalar_select %p172, %s173, %s174
      %p178 = pneg %p172
      %p179 = scmp.eq.s32.totalorder %s19, 7
      %p180 = por %p178, %p179
      %p181 = scmp.ne.s32.totalorder %s173, %s176
      %p182 = scmp.eq.s32.totalorder %s19, 0
      %p183 = por %p181, %p182
      %p184 = scmp.ne.s32.totalorder %s173, %s176
      %p185 = scmp.eq.s32.totalorder %s24, 7
      %p186 = por %p184, %p185
      %p187 = scmp.ne.s32.totalorder %s176, %s177
      %p188 = scmp.eq.s32.totalorder %s24, 0
      %p189 = por %p187, %p188
      %p190 = scmp.ne.s32.totalorder %s176, %s177
      %p191 = scmp.eq.s32.totalorder %s25, 7
      %p192 = por %p190, %p191
      %p194 = scmp.ne.s32.totalorder %s177, %s193
      %p195 = scmp.eq.s32.totalorder %s25, 0
      %p196 = por %p194, %p195
      %s197 = ssub.s32 %s26, %s45
      %s198 = ssub.s32 %s28, %s37
      %s199 = sor.u32 %s197, %s198
      %s200 = ssub.s32 %s27, %s41
      %s201 = sor.u32 %s199, %s200
      %p202 = scmp.eq.s32.totalorder %s201, 0
      %s204 = sadd.s32 %s203, 1
      %s205 = scalar_select %p202, %s203, %s204
      %p208 = pneg %p202
      %p209 = scmp.eq.s32.totalorder %s19, 7
      %p210 = por %p208, %p209
      %p211 = scmp.ne.s32.totalorder %s203, %s206
      %p212 = scmp.eq.s32.totalorder %s19, 0
      %p213 = por %p211, %p212
      %p214 = scmp.ne.s32.totalorder %s203, %s206
      %p215 = scmp.eq.s32.totalorder %s24, 7
      %p216 = por %p214, %p215
      %p217 = scmp.ne.s32.totalorder %s206, %s207
      %p218 = scmp.eq.s32.totalorder %s24, 0
      %p219 = por %p217, %p218
      %p220 = scmp.ne.s32.totalorder %s206, %s207
      %p221 = scmp.eq.s32.totalorder %s25, 7
      %p222 = por %p220, %p221
      %p224 = scmp.ne.s32.totalorder %s207, %s223
      %p225 = scmp.eq.s32.totalorder %s25, 0
      %p226 = por %p224, %p225
      %p227 = scmp.le.s32.totalorder 1, %s19
      %p228 = scmp.lt.s32.totalorder %s19, 9
      %p229 = pnand %p227, %p228
      %p230 = pneg %p229
      // Predicated region
      $region9: #{tpu_custom_call.1} parent=5 // pred_check
        _
      $region10: #{tpu_custom_call.1} parent=5 // pred_check_branch
        %232 = sbr.rel (%p229) target = $region12
      $region11: #{tpu_custom_call.1} parent=5 // pred_region
        %s233 = ssub.s32 %s19, 1
        // Predicated region
        $region13: #{tpu_custom_call.1} parent=11 // pred_check
          %p234 = pneg %p87
        $region14: #{tpu_custom_call.1} parent=11 // pred_check_branch
          %236 = sbr.rel (%p234) target = $region16
        $region15: #{tpu_custom_call.1} parent=11 // pred_region
          _
        $region16: #{tpu_custom_call.1} parent=11 // pred_fallthru
          _
        // Predicated region
        $region17: #{tpu_custom_call.1} parent=11 // pred_check
          %p237 = pneg %p108
        $region18: #{tpu_custom_call.1} parent=11 // pred_check_branch
          %239 = sbr.rel (%p237) target = $region20
        $region19: #{tpu_custom_call.1} parent=11 // pred_region
          _
        $region20: #{tpu_custom_call.1} parent=11 // pred_fallthru
          _
        // Predicated region
        $region21: #{tpu_custom_call.1} parent=11 // pred_check
          %p240 = pneg %p129
        $region22: #{tpu_custom_call.1} parent=11 // pred_check_branch
          %242 = sbr.rel (%p240) target = $region24
        $region23: #{tpu_custom_call.1} parent=11 // pred_region
          _
        $region24: #{tpu_custom_call.1} parent=11 // pred_fallthru
          _
      $region12: #{tpu_custom_call.1} parent=5 // pred_fallthru
        _
      %p243 = scmp.lt.s32.totalorder %s19, 8
      // Predicated region
      $region25: #{tpu_custom_call.1} parent=5 // pred_check
        %p244 = pneg %p243
      $region26: #{tpu_custom_call.1} parent=5 // pred_check_branch
        %246 = sbr.rel (%p244) target = $region28
      $region27: #{tpu_custom_call.1} parent=5 // pred_region
        // Predicated region
        $region29: #{tpu_custom_call.1} parent=27 // pred_check
          %p247 = pneg %p60
        $region30: #{tpu_custom_call.1} parent=27 // pred_check_branch
          %249 = sbr.rel (%p247) target = $region32
        $region31: #{tpu_custom_call.1} parent=27 // pred_region
          %p250 = scmp.lt.s32.totalorder %s26, 1
          %s251 = scalar_select %p250, %s26, 1
          %p252 = scmp.lt.s32.totalorder %s27, 0
          %s253 = scalar_select %p252, %s27, 0
          %s254 = sadd.s32 %s253, %s251
          %s255 = smul.addr %s254, 8
          %s256 = scalar_lea.vmem %s0, %s255
        $region32: #{tpu_custom_call.1} parent=27 // pred_fallthru
          _
      $region28: #{tpu_custom_call.1} parent=5 // pred_fallthru
        _
      %p257 = scmp.le.s32.totalorder 1, %s19
      %p258 = scmp.lt.s32.totalorder %s19, 9
      %p259 = pnand %p257, %p258
      %p260 = pneg %p259
      // Predicated region
      $region33: #{tpu_custom_call.1} parent=5 // pred_check
        _
      $region34: #{tpu_custom_call.1} parent=5 // pred_check_branch
        %262 = sbr.rel (%p259) target = $region36
      $region35: #{tpu_custom_call.1} parent=5 // pred_region
        %s263 = ssub.s32 %s19, 1
        %p264 = scmp.lt.s32.totalorder %s29, 1
        %s265 = scalar_select %p264, %s29, 1
        %p266 = scmp.lt.s32.totalorder %s30, 0
        %s267 = scalar_select %p266, %s30, 0
        %s268 = sadd.s32 %s267, %s265
        %s269 = smul.addr %s268, 8
        %s270 = scalar_lea.vmem %s0, %s269
        %p271 = pneg %p66
        %p272 = pneg %p63
        %p273 = pneg %p87
        %p274 = pneg %p84
        %p275 = pneg %p108
        %p276 = pneg %p105
        %p277 = pneg %p129
        %p278 = pneg %p126
        %p279 = pneg %p159
        %p280 = pneg %p156
        %s281 = sand.u32 %s146, 1
        %s282 = scalar_lea.sflag [#allocation3], %s281
        %s283 = sand.u32 %s146, 1
        %s284 = smul.addr %s283, 8
        %s285 = scalar_lea.vmem [#allocation2], %s284
        %p286 = pneg %p189
        %p287 = pneg %p186
        %s288 = sand.u32 %s24, 1
        %s289 = scalar_lea.sflag [#allocation5], %s288
        %s290 = sand.u32 %s176, 1
        %s291 = smul.addr %s290, 8
        %s292 = scalar_lea.vmem [#allocation4], %s291
        %p293 = pneg %p219
        %p294 = pneg %p216
        %s295 = sand.u32 %s24, 1
        %s296 = scalar_lea.sflag [#allocation5], %s295
        %s297 = sand.u32 %s206, 1
        %s298 = smul.addr %s297, 8
        %s299 = scalar_lea.vmem [#allocation6], %s298
        %p300 = scmp.lt.s32.totalorder %s29, 1
        %s301 = scalar_select %p300, %s29, 1
        %p302 = scmp.lt.s32.totalorder %s30, 0
        %s303 = scalar_select %p302, %s30, 0
        %s304 = sadd.s32 %s303, %s301
        %s305 = smul.addr %s304, 8
        %s306 = scalar_lea.vmem %s0, %s305
        %v307 = vld [vmem:[%s306] sm:$0xff]
        %s308 = smul.u32 %s31, 32
        %s309 = scalar_lea.vmem %s1, %s308
        %v310 = vld [vmem:[%s309] sm:$0xff]
        %v311 = vld [vmem:[%s309 + $0x8] sm:$0xff]
        %v312 = vld [vmem:[%s309 + $0x10] sm:$0xff]
        %v313 = vld [vmem:[%s309 + $0x18] sm:$0xff]
        %vm314 = vcmask 261120
        %v316 = vsel %vm314, %v307, 0
        %318 = vmatprep.subr.mxu0 0.0
        %319 = vmatpush1.msra.mxu0 %v310
        %320 = vmatprep.subr.mxu0 0.0
        %321 = vmatpush1.msra.mxu0 %v311
        %322 = vmatprep.subr.mxu0 0.0
        %323 = vmatpush1.msra.mxu0 %v312
        %324 = vmatprep.subr.mxu0 0.0
        %325 = vmatpush1.msra.mxu0 %v313
        %326 = vmatprep.subr.mxu0 0.0
        %327 = vmatpush1.msra.mxu0 0.0
        %328 = vmatprep.subr.mxu0 0.0
        %329 = vmatpush1.msra.mxu0 0.0
        %330 = vmatprep.subr.mxu0 0.0
        %331 = vmatpush1.msra.mxu0 0.0
        %332 = vmatprep.subr.mxu0 0.0
        %333 = vmatpush1.msra.mxu0 0.0
        %334 = vmatprep.subr.mxu0 0.0
        %335 = vmatpush1.msra.mxu0 0.0
        %336 = vmatprep.subr.mxu0 0.0
        %337 = vmatpush1.msra.mxu0 0.0
        %338 = vmatprep.subr.mxu0 0.0
        %339 = vmatpush1.msra.mxu0 0.0
        %340 = vmatprep.subr.mxu0 0.0
        %341 = vmatpush1.msra.mxu0 0.0
        %342 = vmatprep.subr.mxu0 0.0
        %343 = vmatpush1.msra.mxu0 0.0
        %344 = vmatprep.subr.mxu0 0.0
        %345 = vmatpush1.msra.mxu0 0.0
        %346 = vmatprep.subr.mxu0 0.0
        %347 = vmatpush1.msra.mxu0 0.0
        %348 = vmatprep.subr.mxu0 0.0
        %349 = vmatpush1.msra.mxu0 0.0
        %350 = vmatprep.subr.mxu0 0.0
        %351 = vmatpush1.msra.mxu0 0.0
        %352 = vmatprep.subr.mxu0 0.0
        %353 = vmatpush1.msra.mxu0 0.0
        %354 = vmatprep.subr.mxu0 0.0
        %355 = vmatpush1.msra.mxu0 0.0
        %356 = vmatprep.subr.mxu0 0.0
        %357 = vmatpush1.msra.mxu0 0.0
        %358 = vmatprep.subr.mxu0 0.0
        %359 = vmatpush1.msra.mxu0 0.0
        %360 = vmatprep.subr.mxu0 0.0
        %361 = vmatpush1.msra.mxu0 0.0
        %362 = vmatprep.subr.mxu0 0.0
        %363 = vmatpush1.msra.mxu0 0.0
        %364 = vmatprep.subr.mxu0 0.0
        %365 = vmatpush1.msra.mxu0 0.0
        %366 = vmatprep.subr.mxu0 0.0
        %367 = vmatpush1.msra.mxu0 0.0
        %368 = vmatprep.subr.mxu0 0.0
        %369 = vmatpush1.msra.mxu0 0.0
        %370 = vmatprep.subr.mxu0 0.0
        %371 = vmatpush1.msra.mxu0 0.0
        %372 = vmatprep.subr.mxu0 0.0
        %373 = vmatpush1.msra.mxu0 0.0
        %374 = vmatprep.subr.mxu0 0.0
        %375 = vmatpush1.msra.mxu0 0.0
        %376 = vmatprep.subr.mxu0 0.0
        %377 = vmatpush1.msra.mxu0 0.0
        %378 = vmatprep.subr.mxu0 0.0
        %379 = vmatpush1.msra.mxu0 0.0
        %380 = vmatprep.subr.mxu0 0.0
        %381 = vmatpush1.msra.mxu0 0.0
        %382 = vmatprep.mubr.f32.mxu0 0.0
        %383 = vmatmul.mubr.f32.gmra.mrb[0].mxu0 %v316
        %v384 = vpop.f32.mrb[0].mxu0
        %v385 = vadd.f32 0.0, %v384
        %v386 = vpop.f32.mrb[0].mxu0
        %387 = vdwg.mxu0
        %vm388 = vcmask 64512
        %389 = vst.msk [vmem:[%s285] sm:$0xff] %vm388, %v385
        %s390 = scalar_lea.vmem %s2, %s308
        %v391 = vld [vmem:[%s390] sm:$0xff]
        %v392 = vld [vmem:[%s390 + $0x8] sm:$0xff]
        %v393 = vld [vmem:[%s390 + $0x10] sm:$0xff]
        %v394 = vld [vmem:[%s390 + $0x18] sm:$0xff]
        %395 = vmatprep.subr.mxu0 0.0
        %396 = vmatpush1.msra.mxu0 %v391
        %397 = vmatprep.subr.mxu0 0.0
        %398 = vmatpush1.msra.mxu0 %v392
        %399 = vmatprep.subr.mxu0 0.0
        %400 = vmatpush1.msra.mxu0 %v393
        %401 = vmatprep.subr.mxu0 0.0
        %402 = vmatpush1.msra.mxu0 %v394
        %403 = vmatprep.subr.mxu0 0.0
        %404 = vmatpush1.msra.mxu0 0.0
        %405 = vmatprep.subr.mxu0 0.0
        %406 = vmatpush1.msra.mxu0 0.0
        %407 = vmatprep.subr.mxu0 0.0
        %408 = vmatpush1.msra.mxu0 0.0
        %409 = vmatprep.subr.mxu0 0.0
        %410 = vmatpush1.msra.mxu0 0.0
        %411 = vmatprep.subr.mxu0 0.0
        %412 = vmatpush1.msra.mxu0 0.0
        %413 = vmatprep.subr.mxu0 0.0
        %414 = vmatpush1.msra.mxu0 0.0
        %415 = vmatprep.subr.mxu0 0.0
        %416 = vmatpush1.msra.mxu0 0.0
        %417 = vmatprep.subr.mxu0 0.0
        %418 = vmatpush1.msra.mxu0 0.0
        %419 = vmatprep.subr.mxu0 0.0
        %420 = vmatpush1.msra.mxu0 0.0
        %421 = vmatprep.subr.mxu0 0.0
        %422 = vmatpush1.msra.mxu0 0.0
        %423 = vmatprep.subr.mxu0 0.0
        %424 = vmatpush1.msra.mxu0 0.0
        %425 = vmatprep.subr.mxu0 0.0
        %426 = vmatpush1.msra.mxu0 0.0
        %427 = vmatprep.subr.mxu0 0.0
        %428 = vmatpush1.msra.mxu0 0.0
        %429 = vmatprep.subr.mxu0 0.0
        %430 = vmatpush1.msra.mxu0 0.0
        %431 = vmatprep.subr.mxu0 0.0
        %432 = vmatpush1.msra.mxu0 0.0
        %433 = vmatprep.subr.mxu0 0.0
        %434 = vmatpush1.msra.mxu0 0.0
        %435 = vmatprep.subr.mxu0 0.0
        %436 = vmatpush1.msra.mxu0 0.0
        %437 = vmatprep.subr.mxu0 0.0
        %438 = vmatpush1.msra.mxu0 0.0
        %439 = vmatprep.subr.mxu0 0.0
        %440 = vmatpush1.msra.mxu0 0.0
        %441 = vmatprep.subr.mxu0 0.0
        %442 = vmatpush1.msra.mxu0 0.0
        %443 = vmatprep.subr.mxu0 0.0
        %444 = vmatpush1.msra.mxu0 0.0
        %445 = vmatprep.subr.mxu0 0.0
        %446 = vmatpush1.msra.mxu0 0.0
        %447 = vmatprep.subr.mxu0 0.0
        %448 = vmatpush1.msra.mxu0 0.0
        %449 = vmatprep.subr.mxu0 0.0
        %450 = vmatpush1.msra.mxu0 0.0
        %451 = vmatprep.subr.mxu0 0.0
        %452 = vmatpush1.msra.mxu0 0.0
        %453 = vmatprep.subr.mxu0 0.0
        %454 = vmatpush1.msra.mxu0 0.0
        %455 = vmatprep.subr.mxu0 0.0
        %456 = vmatpush1.msra.mxu0 0.0
        %457 = vmatprep.subr.mxu0 0.0
        %458 = vmatpush1.msra.mxu0 0.0
        %459 = vmatprep.mubr.f32.mxu0 0.0
        %460 = vmatmul.mubr.f32.gmra.mrb[0].mxu0 %v316
        %v461 = vpop.f32.mrb[0].mxu0
        %v462 = vadd.f32 0.0, %v461
        %v463 = vpop.f32.mrb[0].mxu0
        %464 = vdwg.mxu0
        %465 = vst.msk [vmem:[%s292] sm:$0xff] %vm388, %v462
        %s466 = scalar_lea.vmem %s3, %s308
        %v467 = vld [vmem:[%s466] sm:$0xff]
        %v468 = vld [vmem:[%s466 + $0x8] sm:$0xff]
        %v469 = vld [vmem:[%s466 + $0x10] sm:$0xff]
        %v470 = vld [vmem:[%s466 + $0x18] sm:$0xff]
        %471 = vmatprep.subr.mxu0 0.0
        %472 = vmatpush1.msra.mxu0 %v467
        %473 = vmatprep.subr.mxu0 0.0
        %474 = vmatpush1.msra.mxu0 %v468
        %475 = vmatprep.subr.mxu0 0.0
        %476 = vmatpush1.msra.mxu0 %v469
        %477 = vmatprep.subr.mxu0 0.0
        %478 = vmatpush1.msra.mxu0 %v470
        %479 = vmatprep.subr.mxu0 0.0
        %480 = vmatpush1.msra.mxu0 0.0
        %481 = vmatprep.subr.mxu0 0.0
        %482 = vmatpush1.msra.mxu0 0.0
        %483 = vmatprep.subr.mxu0 0.0
        %484 = vmatpush1.msra.mxu0 0.0
        %485 = vmatprep.subr.mxu0 0.0
        %486 = vmatpush1.msra.mxu0 0.0
        %487 = vmatprep.subr.mxu0 0.0
        %488 = vmatpush1.msra.mxu0 0.0
        %489 = vmatprep.subr.mxu0 0.0
        %490 = vmatpush1.msra.mxu0 0.0
        %491 = vmatprep.subr.mxu0 0.0
        %492 = vmatpush1.msra.mxu0 0.0
        %493 = vmatprep.subr.mxu0 0.0
        %494 = vmatpush1.msra.mxu0 0.0
        %495 = vmatprep.subr.mxu0 0.0
        %496 = vmatpush1.msra.mxu0 0.0
        %497 = vmatprep.subr.mxu0 0.0
        %498 = vmatpush1.msra.mxu0 0.0
        %499 = vmatprep.subr.mxu0 0.0
        %500 = vmatpush1.msra.mxu0 0.0
        %501 = vmatprep.subr.mxu0 0.0
        %502 = vmatpush1.msra.mxu0 0.0
        %503 = vmatprep.subr.mxu0 0.0
        %504 = vmatpush1.msra.mxu0 0.0
        %505 = vmatprep.subr.mxu0 0.0
        %506 = vmatpush1.msra.mxu0 0.0
        %507 = vmatprep.subr.mxu0 0.0
        %508 = vmatpush1.msra.mxu0 0.0
        %509 = vmatprep.subr.mxu0 0.0
        %510 = vmatpush1.msra.mxu0 0.0
        %511 = vmatprep.subr.mxu0 0.0
        %512 = vmatpush1.msra.mxu0 0.0
        %513 = vmatprep.subr.mxu0 0.0
        %514 = vmatpush1.msra.mxu0 0.0
        %515 = vmatprep.subr.mxu0 0.0
        %516 = vmatpush1.msra.mxu0 0.0
        %517 = vmatprep.subr.mxu0 0.0
        %518 = vmatpush1.msra.mxu0 0.0
        %519 = vmatprep.subr.mxu0 0.0
        %520 = vmatpush1.msra.mxu0 0.0
        %521 = vmatprep.subr.mxu0 0.0
        %522 = vmatpush1.msra.mxu0 0.0
        %523 = vmatprep.subr.mxu0 0.0
        %524 = vmatpush1.msra.mxu0 0.0
        %525 = vmatprep.subr.mxu0 0.0
        %526 = vmatpush1.msra.mxu0 0.0
        %527 = vmatprep.subr.mxu0 0.0
        %528 = vmatpush1.msra.mxu0 0.0
        %529 = vmatprep.subr.mxu0 0.0
        %530 = vmatpush1.msra.mxu0 0.0
        %531 = vmatprep.subr.mxu0 0.0
        %532 = vmatpush1.msra.mxu0 0.0
        %533 = vmatprep.subr.mxu0 0.0
        %534 = vmatpush1.msra.mxu0 0.0
        %535 = vmatprep.mubr.f32.mxu0 0.0
        %536 = vmatmul.mubr.f32.gmra.mrb[0].mxu0 %v316
        %v537 = vpop.f32.mrb[0].mxu0
        %v538 = vadd.f32 0.0, %v537
        %v539 = vpop.f32.mrb[0].mxu0
        %540 = vdwg.mxu0
        %541 = vst.msk [vmem:[%s299] sm:$0xff] %vm388, %v538
        %s542 = sand.u32 %s146, 1
        %s543 = scalar_lea.sflag [#allocation3], %s542
        %s544 = sand.u32 %s146, 1
        %s545 = smul.addr %s544, 8
        %s546 = scalar_lea.vmem [#allocation2], %s545
        %s547 = sand.u32 %s24, 1
        %s548 = scalar_lea.sflag [#allocation5], %s547
        %s549 = sand.u32 %s176, 1
        %s550 = smul.addr %s549, 8
        %s551 = scalar_lea.vmem [#allocation4], %s550
        %s552 = sand.u32 %s24, 1
        %s553 = scalar_lea.sflag [#allocation5], %s552
        %s554 = sand.u32 %s206, 1
        %s555 = smul.addr %s554, 8
        %s556 = scalar_lea.vmem [#allocation6], %s555
        // Predicated region
        $region37: #{tpu_custom_call.1} parent=35 // pred_check
          %p557 = pneg %p156
        $region38: #{tpu_custom_call.1} parent=35 // pred_check_branch
          %559 = sbr.rel (%p557) target = $region40
        $region39: #{tpu_custom_call.1} parent=35 // pred_region
          %s561 = ssub.s32 128, 128
          %562 = vsyncadd %s543, %s561
          %s563 = sadd.s32 %s30, %s31
          %s564 = smul.addr %s29, 4
          %s565 = sadd.s32 %s563, %s564
          %s566 = smul.addr %s565, 128
          %s567 = scalar_lea.hbm %s4, %s566
          %s569 = sshll.u32 %s546, 4
          %s570 = int_to_ptr.vmem [resolvable:$true] %s569
          %572 = dma.vmem_to_hbm [thread:$0]  %s570, 128, %s567, %s543
        $region40: #{tpu_custom_call.1} parent=35 // pred_fallthru
          _
        // Predicated region
        $region41: #{tpu_custom_call.1} parent=35 // pred_check
          %p573 = pneg %p186
        $region42: #{tpu_custom_call.1} parent=35 // pred_check_branch
          %575 = sbr.rel (%p573) target = $region44
        $region43: #{tpu_custom_call.1} parent=35 // pred_region
          %s577 = ssub.s32 128, 128
          %578 = vsyncadd %s548, %s577
          %s579 = sadd.s32 %s30, %s31
          %s580 = smul.addr %s29, 4
          %s581 = sadd.s32 %s579, %s580
          %s582 = smul.addr %s581, 128
          %s583 = scalar_lea.hbm %s5, %s582
          %s585 = sshll.u32 %s551, 4
          %s586 = int_to_ptr.vmem [resolvable:$true] %s585
          %588 = dma.vmem_to_hbm [thread:$0]  %s586, 128, %s583, %s548
        $region44: #{tpu_custom_call.1} parent=35 // pred_fallthru
          _
        // Predicated region
        $region45: #{tpu_custom_call.1} parent=35 // pred_check
          %p589 = pneg %p216
        $region46: #{tpu_custom_call.1} parent=35 // pred_check_branch
          %591 = sbr.rel (%p589) target = $region48
        $region47: #{tpu_custom_call.1} parent=35 // pred_region
          %s593 = ssub.s32 128, 128
          %594 = vsyncadd %s553, %s593
          %s595 = sadd.s32 %s30, %s31
          %s596 = smul.addr %s29, 4
          %s597 = sadd.s32 %s595, %s596
          %s598 = smul.addr %s597, 128
          %s599 = scalar_lea.hbm %s6, %s598
          %s601 = sshll.u32 %s556, 4
          %s602 = int_to_ptr.vmem [resolvable:$true] %s601
          %604 = dma.vmem_to_hbm [thread:$0]  %s602, 128, %s599, %s553
        $region48: #{tpu_custom_call.1} parent=35 // pred_fallthru
          _
      $region36: #{tpu_custom_call.1} parent=5 // pred_fallthru
        _
      %p605 = scmp.le.s32.totalorder 2, %s19
      // Predicated region
      $region49: #{tpu_custom_call.1} parent=5 // pred_check
        %p606 = pneg %p605
      $region50: #{tpu_custom_call.1} parent=5 // pred_check_branch
        %608 = sbr.rel (%p606) target = $region52
      $region51: #{tpu_custom_call.1} parent=5 // pred_region
        %s609 = ssub.s32 %s19, 2
        // Predicated region
        $region53: #{tpu_custom_call.1} parent=51 // pred_check
          %p610 = pneg %p162
        $region54: #{tpu_custom_call.1} parent=51 // pred_check_branch
          %612 = sbr.rel (%p610) target = $region56
        $region55: #{tpu_custom_call.1} parent=51 // pred_region
          %s613 = sand.u32 %s147, 1
          %s614 = scalar_lea.sflag [#allocation3], %s613
          %s615 = sand.u32 %s147, 1
          %s616 = smul.addr %s615, 8
          %s617 = scalar_lea.vmem [#allocation2], %s616
          %618 = dma.done %s614, 128
        $region56: #{tpu_custom_call.1} parent=51 // pred_fallthru
          _
        // Predicated region
        $region57: #{tpu_custom_call.1} parent=51 // pred_check
          %p619 = pneg %p192
        $region58: #{tpu_custom_call.1} parent=51 // pred_check_branch
          %621 = sbr.rel (%p619) target = $region60
        $region59: #{tpu_custom_call.1} parent=51 // pred_region
          %s622 = sand.u32 %s25, 1
          %s623 = scalar_lea.sflag [#allocation5], %s622
          %s624 = sand.u32 %s177, 1
          %s625 = smul.addr %s624, 8
          %s626 = scalar_lea.vmem [#allocation4], %s625
          %627 = dma.done %s623, 128
        $region60: #{tpu_custom_call.1} parent=51 // pred_fallthru
          _
        // Predicated region
        $region61: #{tpu_custom_call.1} parent=51 // pred_check
          %p628 = pneg %p222
        $region62: #{tpu_custom_call.1} parent=51 // pred_check_branch
          %630 = sbr.rel (%p628) target = $region64
        $region63: #{tpu_custom_call.1} parent=51 // pred_region
          %s631 = sand.u32 %s25, 1
          %s632 = scalar_lea.sflag [#allocation5], %s631
          %s633 = sand.u32 %s207, 1
          %s634 = smul.addr %s633, 8
          %s635 = scalar_lea.vmem [#allocation6], %s634
          %636 = dma.done %s632, 128
        $region64: #{tpu_custom_call.1} parent=51 // pred_fallthru
          _
      $region52: #{tpu_custom_call.1} parent=5 // pred_fallthru
        _
    $region6: #{tpu_custom_call.1} parent=1 // loop_footer
      %s23 = sadd.s32 1, %s19
    $region7: #{tpu_custom_call.1} parent=1 // loop_footer_branch
      %18 = sbr.rel target = $region3
    $region8: #{tpu_custom_call.1} parent=1 // loop_exit
      _
    %637 = vsyncpa [#allocation3], 1
    %s638 = scalar_lea.sflag [#allocation3], 1
    %639 = vsyncpa %s638, 1
    %640 = vsyncpa [#allocation5], 1
    %s641 = scalar_lea.sflag [#allocation5], 1
    %642 = vsyncpa %s641, 1

</llo_original>
